<compile_context>
chip_gen: v5e
topology: v5e:2x2
jax: 0.10.0
libtpu: 0.0.40
codegen_flags: <defaults>
</compile_context>

<pallas_src>
import jax
import jax.numpy as jnp
from jax.experimental import pallas as pl
from jax.experimental.pallas import tpu as pltpu


# ---------------------------------------------------------------------------
# Kernel: per (batch-tile, point-split, point-tile) step, compute folded
# conv1+conv2+ReLU and max-accumulate pooled features into the resident
# (1, TB, 128) output block of the partial-max output.
# ---------------------------------------------------------------------------
def pointnet_feat_kernel(x_ref, w1_ref, b1_ref, w2_ref, b2_ref, out_ref):
    ni = pl.program_id(2)                      # inner point-tile index (reduction axis)

    @pl.when(ni == 0)
    def _():
        # ReLU output is >= 0, so 0 is the identity for the running max.
        out_ref[...] = jnp.zeros_like(out_ref)

    tb, tn, c = x_ref.shape
    x = x_ref[...].reshape(tb * tn, c)                                # (rows, 3) bf16/f32

    # layer1: Conv1d(3->64,k=1) with BN folded in, f32 accumulate, then ReLU
    h1 = jnp.dot(x, w1_ref[...], preferred_element_type=jnp.float32) + b1_ref[...]
    h1 = jnp.maximum(h1, 0.0)                                         # (rows, 64) f32

    # layer2: Conv1d(64->128,k=1) with BN folded in; bf16 MXU operands, f32 accumulate
    h1 = h1.astype(w2_ref.dtype)
    h2 = jnp.dot(h1, w2_ref[...], preferred_element_type=jnp.float32) + b2_ref[...]
    h2 = jnp.maximum(h2, 0.0)                                         # (rows, 128) f32

    # max over the points in this tile, then running max into the output block
    pooled = jnp.max(h2.reshape(tb, tn, 128), axis=1)                 # (tb, 128)
    out_ref[...] = jnp.maximum(out_ref[...], pooled)                  # (1, tb, 128)


# ---------------------------------------------------------------------------
# Tile selection (padded-VMEM aware)
# ---------------------------------------------------------------------------
def _pick_tiles(B, N, rows_target=8192, vmem_budget=24 * 1024 * 1024):
    # Batch tile: largest multiple-of-8 divisor of B, capped at 32 (never the
    # full batch unless B has no such divisor; then tb == B is still a legal
    # output block because it equals the full dim).
    tb = B
    for d in range(min(B, 32), 0, -1):
        if B % d == 0 and d % 8 == 0:
            tb = d
            break

    # One-grid-step VMEM footprint, using PADDED sizes: the (...,3) x tile pads to
    # a full 128-lane row per point; budget x at 4 B/elem (worst case, bf16 halves it).
    def step_bytes(rows):
        x_tile = 2 * rows * 128 * 4      # double-buffered, lane-padded x
        h1 = rows * 128 * 4              # f32 (rows, 64) padded to 128 lanes
        h1b = rows * 128 * 2             # bf16 copy feeding the 2nd matmul
        h2 = rows * 128 * 4              # f32 (rows, 128)
        out = 2 * tb * 128 * 4           # resident (tb,128) accumulator block
        return x_tile + h1 + h1b + h2 + out

    # Point tile: largest multiple-of-8 divisor of N with rows/step <= target and
    # the padded footprint inside the budget.
    tn = None
    for d in range(N, 7, -1):
        if N % d == 0 and d % 8 == 0 and tb * d <= rows_target \
                and step_bytes(tb * d) <= vmem_budget:
            tn = d
            break
    if tn is None:
        tn = next(d for d in range(8, N + 1) if N % d == 0 and d % 8 == 0)
    return tb, tn


# ---------------------------------------------------------------------------
# Wrapper
# ---------------------------------------------------------------------------
def pointnet_forward(x, folded_params, *, compute_dtype=jnp.bfloat16,
                     rows_per_step=8192):
    """x: (B, N, 3) float32 (same layout the PyTorch module takes). Returns (B, 10)."""
    B, N, C = x.shape
    assert C == 3
    assert N % 8 == 0, "number of points must be a multiple of 8"
    w1f, b1f, w2f, b2f, fcw, fcb = folded_params

    tb, tn = _pick_tiles(B, N, rows_per_step)
    n_tiles = N // tn

    # Guarantee >= 2 parallel grid steps (v7x has 2 TensorCores): if the batch axis
    # collapses to 1 step, split the point axis into `ps` parallel partial maxes.
    ps = 1
    if (B // tb) < 2 and n_tiles > 1:
        for cand in range(2, n_tiles + 1):
            if n_tiles % cand == 0:
                ps = cand
                break
    n_inner = n_tiles // ps
    grid = (B // tb, ps, n_inner)

    # bf16 MXU operands (x, folded weights); biases / accumulation stay f32.
    xq = x.astype(compute_dtype)
    w1q = w1f.astype(compute_dtype)
    w2q = w2f.astype(compute_dtype)

    full = lambda shape: pl.BlockSpec(shape, lambda bi, pi, ni: (0, 0))

    partial = pl.pallas_call(
        pointnet_feat_kernel,
        out_shape=jax.ShapeDtypeStruct((ps, B, 128), jnp.float32),
        grid_spec=pltpu.PrefetchScalarGridSpec(
            num_scalar_prefetch=0,
            grid=grid,
            in_specs=[
                pl.BlockSpec((tb, tn, 3),
                             lambda bi, pi, ni: (bi, pi * n_inner + ni, 0)),  # x tile
                full((3, 64)),     # folded conv1 weight
                full((1, 64)),     # folded conv1 bias (f32)
                full((64, 128)),   # folded conv2 weight
                full((1, 128)),    # folded conv2 bias (f32)
            ],
            # same output block across the inner point axis -> resident max accumulator
            out_specs=pl.BlockSpec((1, tb, 128), lambda bi, pi, ni: (pi, bi, 0)),
        ),
        compiler_params=pltpu.CompilerParams(
            dimension_semantics=("parallel", "parallel", "arbitrary"),
            vmem_limit_bytes=32 * 1024 * 1024),
    )(xq, w1q, b1f, w2q, b2f)

    pooled = jnp.max(partial, axis=0)            # combine parallel point splits (B, 128)
    # fc: Linear(128 -> 10), once for the whole batch, in f32, outside the kernel
    return pooled @ fcw + fcb


# ---------------------------------------------------------------------------
# Parameters: raw (conv + BN running stats + fc) and BN folding
# ---------------------------------------------------------------------------
def make_params(key):
    """Deterministic synthetic parameters matching the PyTorch module shapes."""
    ks = jax.random.split(key, 12)

    # Conv1d(3, 64, k=1): weight (64, 3, 1) stored transposed as (3, 64)
    w1 = 0.1 * jax.random.normal(ks[0], (3, 64), jnp.float32)
    b1 = 0.1 * jax.random.normal(ks[1], (1, 64), jnp.float32)
    # BatchNorm1d(64) eval-mode stats
    g1 = 1.0 + 0.1 * jax.random.normal(ks[2], (1, 64), jnp.float32)
    be1 = 0.1 * jax.random.normal(ks[3], (1, 64), jnp.float32)
    rm1 = 0.1 * jax.random.normal(ks[4], (1, 64), jnp.float32)
    rv1 = jnp.abs(jax.random.normal(ks[5], (1, 64), jnp.float32)) * 0.1 + 1.0

    # Conv1d(64, 128, k=1): weight (128, 64, 1) stored transposed as (64, 128)
    w2 = 0.1 * jax.random.normal(ks[6], (64, 128), jnp.float32)
    b2 = 0.1 * jax.random.normal(ks[7], (1, 128), jnp.float32)
    g2 = 1.0 + 0.1 * jax.random.normal(ks[8], (1, 128), jnp.float32)
    be2 = 0.1 * jax.random.normal(ks[9], (1, 128), jnp.float32)
    rm2 = 0.1 * jax.random.normal(ks[10], (1, 128), jnp.float32)
    rv2 = jnp.abs(jax.random.normal(ks[11], (1, 128), jnp.float32)) * 0.1 + 1.0

    # Linear(128, 10): weight (10, 128) stored transposed as (128, 10)
    kf1, kf2 = jax.random.split(jax.random.fold_in(key, 99))
    fcw = 0.1 * jax.random.normal(kf1, (128, 10), jnp.float32)
    fcb = 0.1 * jax.random.normal(kf2, (1, 10), jnp.float32)

    return (w1, b1, g1, be1, rm1, rv1, w2, b2, g2, be2, rm2, rv2, fcw, fcb)


def fold_bn(params, eps=1e-5):
    """Fold eval-mode BatchNorm into the k=1 conv weights/biases."""
    (w1, b1, g1, be1, rm1, rv1, w2, b2, g2, be2, rm2, rv2, fcw, fcb) = params
    s1 = g1 / jnp.sqrt(rv1 + eps)
    t1 = be1 - rm1 * s1
    s2 = g2 / jnp.sqrt(rv2 + eps)
    t2 = be2 - rm2 * s2
    w1f = w1 * s1            # (3, 64)
    b1f = b1 * s1 + t1       # (1, 64)
    w2f = w2 * s2            # (64, 128)
    b2f = b2 * s2 + t2       # (1, 128)
    return (w1f, b1f, w2f, b2f, fcw, fcb)


# ---------------------------------------------------------------------------
# References
# ---------------------------------------------------------------------------
def reference_forward(x, params, eps=1e-5):
    """Plain-JAX unfused f32 reference mirroring the PyTorch forward (eval-mode BN)."""
    (w1, b1, g1, be1, rm1, rv1, w2, b2, g2, be2, rm2, rv2, fcw, fcb) = params
    h1 = x @ w1 + b1                                              # (B, N, 64)
    h1 = (h1 - rm1) / jnp.sqrt(rv1 + eps) * g1 + be1
    h1 = jnp.maximum(h1, 0.0)
    h2 = h1 @ w2 + b2                                             # (B, N, 128)
    h2 = (h2 - rm2) / jnp.sqrt(rv2 + eps) * g2 + be2
    h2 = jnp.maximum(h2, 0.0)
    pooled = jnp.max(h2, axis=1)                                  # (B, 128)
    return pooled @ fcw + fcb                                     # (B, 10)


def reference_forward_folded(x, folded_params, compute_dtype=jnp.float32):
    """Folded-BN reference with the same operand precision as the kernel path."""
    w1f, b1f, w2f, b2f, fcw, fcb = folded_params
    B, N, _ = x.shape
    xq = x.astype(compute_dtype).reshape(-1, 3)
    h1 = jnp.maximum(jnp.dot(xq, w1f.astype(compute_dtype),
                             preferred_element_type=jnp.float32) + b1f, 0.0)
    h2 = jnp.maximum(jnp.dot(h1.astype(compute_dtype), w2f.astype(compute_dtype),
                             preferred_element_type=jnp.float32) + b2f, 0.0)
    pooled = jnp.max(h2.reshape(B, N, 128), axis=1)
    return pooled @ fcw + fcb


if __name__ == "__main__":
    key = jax.random.PRNGKey(0)
    kx, kp = jax.random.split(key)

    raw_params = make_params(kp)
    folded_params = fold_bn(raw_params)

    # --- small shape, f32 operand path: tight check vs unfused f32 reference ---
    B, N = 2, 64
    x = jax.random.normal(kx, (B, N, 3), jnp.float32)
    out_f32 = jax.block_until_ready(
        pointnet_forward(x, folded_params, compute_dtype=jnp.float32))
    ref = reference_forward(x, raw_params)
    assert out_f32.shape == (B, 10)
    err = float(jnp.max(jnp.abs(out_f32 - ref)))
    assert err < 1e-4, err

    # --- small shape, bf16 MXU-operand perf path: tight vs precision-matched ref ---
    out_bf16 = jax.block_until_ready(pointnet_forward(x, folded_params))
    ref_bf16 = reference_forward_folded(x, folded_params, jnp.bfloat16)
    err = float(jnp.max(jnp.abs(out_bf16 - ref_bf16)))
    assert err < 1e-3, err

    # --- larger shape: exercises the padded-VMEM tile picker, the parallel point
    #     split (ps=2 -> both v7x TensorCores) and the multi-step max reduction ---
    B2, N2 = 4, 8192
    x2 = jax.random.normal(jax.random.fold_in(kx, 1), (B2, N2, 3), jnp.float32)
    out2 = jax.block_until_ready(pointnet_forward(x2, folded_params))
    assert out2.shape == (B2, 10)
    ref2_matched = reference_forward_folded(x2, folded_params, jnp.bfloat16)
    err2 = float(jnp.max(jnp.abs(out2 - ref2_matched)))
    assert err2 < 1e-3, err2
    ref2 = reference_forward(x2, raw_params)          # loose sanity vs unfused f32
    assert float(jnp.max(jnp.abs(out2 - ref2))) < 0.25

    print("KERNEL_OK")
</pallas_src>

<mosaic_0001>
module attributes {stable_mosaic.version = 11 : i64} {
  func.func @pointnet_feat_kernel(%arg0: i32, %arg1: i32, %arg2: i32, %arg3: memref<2x64x3xf32, #tpu.memory_space<vmem>>, %arg4: memref<3x64xf32, #tpu.memory_space<vmem>>, %arg5: memref<1x64xf32, #tpu.memory_space<vmem>>, %arg6: memref<64x128xf32, #tpu.memory_space<vmem>>, %arg7: memref<1x128xf32, #tpu.memory_space<vmem>>, %arg8: memref<1x2x128xf32, #tpu.memory_space<vmem>>) attributes {dimension_semantics = [#tpu.dimension_semantics<parallel>, #tpu.dimension_semantics<parallel>, #tpu.dimension_semantics<arbitrary>], iteration_bounds = array<i64: 1, 1, 1>, scalar_prefetch = 0 : i64, scratch_operands = 0 : i64, tpu.core_type = #tpu.core_type<tc>, window_params = [{transform_indices = @transform_0, window_bounds = array<i64: 2, 64, 3>}, {pipeline_mode = #tpu.pipeline_mode<synchronous>, transform_indices = @transform_1, window_bounds = array<i64: 3, 64>}, {pipeline_mode = #tpu.pipeline_mode<synchronous>, transform_indices = @transform_2, window_bounds = array<i64: 1, 64>}, {pipeline_mode = #tpu.pipeline_mode<synchronous>, transform_indices = @transform_3, window_bounds = array<i64: 64, 128>}, {pipeline_mode = #tpu.pipeline_mode<synchronous>, transform_indices = @transform_4, window_bounds = array<i64: 1, 128>}, {transform_indices = @transform_5, window_bounds = array<i64: 1, 2, 128>}]} {
    %c0_i32 = arith.constant 0 : i32
    %0 = arith.cmpi eq, %arg2, %c0_i32 : i32
    %1 = arith.extui %0 : i1 to i32
    %c0_i32_0 = arith.constant 0 : i32
    %2 = arith.cmpi ne, %1, %c0_i32_0 : i32
    scf.if %2 {
      %cst_21 = arith.constant 0.000000e+00 : f32
      %25 = vector.broadcast %cst_21 : f32 to vector<1x2x128xf32>
      %c0_22 = arith.constant 0 : index
      %c0_23 = arith.constant 0 : index
      %c0_24 = arith.constant 0 : index
      %26 = vector.load %arg8[%c0_22, %c0_23, %c0_24] : memref<1x2x128xf32, #tpu.memory_space<vmem>>, vector<1x2x128xf32>
      tpu.vector_store %arg8[%c0_22, %c0_23, %c0_24], %25 {strides = array<i32>} : memref<1x2x128xf32, #tpu.memory_space<vmem>>, vector<1x2x128xf32>,
    } else {
    }
    %c0 = arith.constant 0 : index
    %c0_1 = arith.constant 0 : index
    %c0_2 = arith.constant 0 : index
    %3 = vector.load %arg3[%c0, %c0_1, %c0_2] : memref<2x64x3xf32, #tpu.memory_space<vmem>>, vector<2x64x3xf32>
    %4 = vector.shape_cast %3 : vector<2x64x3xf32> to vector<128x3xf32>
    %c0_3 = arith.constant 0 : index
    %c0_4 = arith.constant 0 : index
    %5 = vector.load %arg4[%c0_3, %c0_4] : memref<3x64xf32, #tpu.memory_space<vmem>>, vector<3x64xf32>
    %cst = arith.constant dense<0.000000e+00> : vector<128x64xf32>
    %6 = tpu.matmul %4, %5, %cst {dimension_numbers = #tpu.dot_dimension_numbers<[1], [0], [0], [1], [0, 0, 1, 1], [], []>} : vector<128x3xf32>, vector<3x64xf32>, vector<128x64xf32> -> vector<128x64xf32>
    %c0_5 = arith.constant 0 : index
    %c0_6 = arith.constant 0 : index
    %7 = vector.load %arg5[%c0_5, %c0_6] : memref<1x64xf32, #tpu.memory_space<vmem>>, vector<1x64xf32>
    %8 = vector.broadcast %7 : vector<1x64xf32> to vector<128x64xf32>
    %9 = arith.addf %6, %8 : vector<128x64xf32>
    %cst_7 = arith.constant 0.000000e+00 : f32
    %10 = vector.broadcast %cst_7 : f32 to vector<128x64xf32>
    %11 = arith.maximumf %9, %10 : vector<128x64xf32>
    %c0_8 = arith.constant 0 : index
    %c0_9 = arith.constant 0 : index
    %12 = vector.load %arg6[%c0_8, %c0_9] : memref<64x128xf32, #tpu.memory_space<vmem>>, vector<64x128xf32>
    %cst_10 = arith.constant dense<0.000000e+00> : vector<128x128xf32>
    %13 = tpu.matmul %11, %12, %cst_10 {dimension_numbers = #tpu.dot_dimension_numbers<[1], [0], [0], [1], [0, 0, 1, 1], [], []>} : vector<128x64xf32>, vector<64x128xf32>, vector<128x128xf32> -> vector<128x128xf32>
    %c0_11 = arith.constant 0 : index
    %c0_12 = arith.constant 0 : index
    %14 = vector.load %arg7[%c0_11, %c0_12] : memref<1x128xf32, #tpu.memory_space<vmem>>, vector<1x128xf32>
    %15 = vector.broadcast %14 : vector<1x128xf32> to vector<128x128xf32>
    %16 = arith.addf %13, %15 : vector<128x128xf32>
    %cst_13 = arith.constant 0.000000e+00 : f32
    %17 = vector.broadcast %cst_13 : f32 to vector<128x128xf32>
    %18 = arith.maximumf %16, %17 : vector<128x128xf32>
    %19 = vector.shape_cast %18 : vector<128x128xf32> to vector<2x64x128xf32>
    %cst_14 = arith.constant dense<0xFF800000> : vector<2x128xf32>
    %20 = vector.multi_reduction <maximumf>, %19, %cst_14 [1] : vector<2x64x128xf32> to vector<2x128xf32>
    %c0_15 = arith.constant 0 : index
    %c0_16 = arith.constant 0 : index
    %c0_17 = arith.constant 0 : index
    %21 = vector.load %arg8[%c0_15, %c0_16, %c0_17] : memref<1x2x128xf32, #tpu.memory_space<vmem>>, vector<1x2x128xf32>
    %22 = vector.shape_cast %20 : vector<2x128xf32> to vector<1x2x128xf32>
    %23 = arith.maximumf %21, %22 : vector<1x2x128xf32>
    %c0_18 = arith.constant 0 : index
    %c0_19 = arith.constant 0 : index
    %c0_20 = arith.constant 0 : index
    %24 = vector.load %arg8[%c0_18, %c0_19, %c0_20] : memref<1x2x128xf32, #tpu.memory_space<vmem>>, vector<1x2x128xf32>
    tpu.vector_store %arg8[%c0_18, %c0_19, %c0_20], %23 {strides = array<i32>} : memref<1x2x128xf32, #tpu.memory_space<vmem>>, vector<1x2x128xf32>,
    return
  }
  func.func @transform_0(%arg0: i32, %arg1: i32, %arg2: i32) -> (i32, i32, i32) {
    %c1_i32 = arith.constant 1 : i32
    %0 = arith.muli %arg1, %c1_i32 : i32
    %1 = arith.addi %0, %arg2 : i32
    %c0_i32 = arith.constant 0 : i32
    %c0_i32_0 = arith.constant 0 : i32
    return %arg0, %1, %c0_i32 : i32, i32, i32
  }
  func.func @transform_1(%arg0: i32, %arg1: i32, %arg2: i32) -> (i32, i32) {
    %c0_i32 = arith.constant 0 : i32
    %c0_i32_0 = arith.constant 0 : i32
    %c0_i32_1 = arith.constant 0 : i32
    return %c0_i32, %c0_i32_0 : i32, i32
  }
  func.func @transform_2(%arg0: i32, %arg1: i32, %arg2: i32) -> (i32, i32) {
    %c0_i32 = arith.constant 0 : i32
    %c0_i32_0 = arith.constant 0 : i32
    %c0_i32_1 = arith.constant 0 : i32
    return %c0_i32, %c0_i32_0 : i32, i32
  }
  func.func @transform_3(%arg0: i32, %arg1: i32, %arg2: i32) -> (i32, i32) {
    %c0_i32 = arith.constant 0 : i32
    %c0_i32_0 = arith.constant 0 : i32
    %c0_i32_1 = arith.constant 0 : i32
    return %c0_i32, %c0_i32_0 : i32, i32
  }
  func.func @transform_4(%arg0: i32, %arg1: i32, %arg2: i32) -> (i32, i32) {
    %c0_i32 = arith.constant 0 : i32
    %c0_i32_0 = arith.constant 0 : i32
    %c0_i32_1 = arith.constant 0 : i32
    return %c0_i32, %c0_i32_0 : i32, i32
  }
  func.func @transform_5(%arg0: i32, %arg1: i32, %arg2: i32) -> (i32, i32, i32) {
    %c0_i32 = arith.constant 0 : i32
    %c0_i32_0 = arith.constant 0 : i32
    return %arg1, %arg0, %c0_i32 : i32, i32, i32
  }
}

</mosaic_0001>

<llo_original>
// kernel: tpu_custom_call.1
$region0: #{tpu_custom_call.1}
  #allocation0 [shape = 'u32[]', space=smem, size = 0x4, offset = 0x4, fixed_abs, tag = 'smem constant byte address 0x4 - core index']
  #allocation1 [shape = 'u32[72,128]{1,0:T(1,128)}', space=vmem, size = 0x9000, scoped, tag = 'internal scratch']
  %s0 = inlined_call_operand.vmem [shape: f32[2,64,3], index: 0, kind: input, shape index: {}]
  %s1 = inlined_call_operand.vmem [shape: f32[3,64], index: 1, kind: input, shape index: {}]
  %s2 = inlined_call_operand.vmem [shape: f32[1,64], index: 2, kind: input, shape index: {}]
  %s3 = inlined_call_operand.vmem [shape: f32[64,128], index: 3, kind: input, shape index: {}]
  %s4 = inlined_call_operand.vmem [shape: f32[1,128], index: 4, kind: input, shape index: {}]
  %s5 = inlined_call_operand.hbm [shape: f32[1,2,128], index: 5, kind: output, shape index: {}]
  %s6 = sld [smem:[#allocation0]]
  $region34: #{tpu_custom_call.1} parent=0
    _
  %s8 = ssub.s32 1, %s6
  %s9 = scalar_select 0, %s8, %s6
  $region1: #{tpu_custom_call.1} parent=0
    #allocation2 [shape = 'u8[1024]{0}', space=vmem, size = 0x400, scoped, tag = 'output window, operand 0, single buffered']
    #allocation3 [shape = 's32[1]{0}', space=sflag, size = 0x4, scoped, tag = 'scoped memory for tpu_custom_call.1']
    %10 = vsyncpa [#allocation3], 0
    // Predicated region
    $region2: #{tpu_custom_call.1} parent=1 // pred_check
      _
    $region3: #{tpu_custom_call.1} parent=1 // pred_check_branch
      %12 = sbr.rel (0) target = $region5
    $region4: #{tpu_custom_call.1} parent=1 // pred_region
      %s13 = sadd.s32 0, 0
      %s14 = smul.u32 8, %s13
      %p15 = scmp.lt.s32.totalorder %s14, 7
      %s16 = scalar_select %p15, %s14, 7
      %s17 = smul.addr %s16, 8
      %s18 = scalar_lea.vmem %s0, %s17
      %s19 = sadd.s32 0, 0
      %s20 = smul.u32 8, %s19
    $region5: #{tpu_custom_call.1} parent=1 // pred_fallthru
      _
    // Predicated region
    $region6: #{tpu_custom_call.1} parent=1 // pred_check
      _
    $region7: #{tpu_custom_call.1} parent=1 // pred_check_branch
      %22 = sbr.rel (0) target = $region9
    $region8: #{tpu_custom_call.1} parent=1 // pred_region
      _
    $region9: #{tpu_custom_call.1} parent=1 // pred_fallthru
      _
    // Predicated region
    $region10: #{tpu_custom_call.1} parent=1 // pred_check
      _
    $region11: #{tpu_custom_call.1} parent=1 // pred_check_branch
      %24 = sbr.rel (0) target = $region13
    $region12: #{tpu_custom_call.1} parent=1 // pred_region
      _
    $region13: #{tpu_custom_call.1} parent=1 // pred_fallthru
      _
    // Predicated region
    $region14: #{tpu_custom_call.1} parent=1 // pred_check
      _
    $region15: #{tpu_custom_call.1} parent=1 // pred_check_branch
      %26 = sbr.rel (0) target = $region17
    $region16: #{tpu_custom_call.1} parent=1 // pred_region
      _
    $region17: #{tpu_custom_call.1} parent=1 // pred_fallthru
      _
    // Predicated region
    $region18: #{tpu_custom_call.1} parent=1 // pred_check
      _
    $region19: #{tpu_custom_call.1} parent=1 // pred_check_branch
      %28 = sbr.rel (0) target = $region21
    $region20: #{tpu_custom_call.1} parent=1 // pred_region
      _
    $region21: #{tpu_custom_call.1} parent=1 // pred_fallthru
      _
    %s29 = sadd.s32 0, 0
    %s30 = smul.u32 8, %s29
    %p31 = scmp.lt.s32.totalorder %s30, 7
    %s32 = scalar_select %p31, %s30, 7
    %s33 = smul.addr %s32, 8
    %s34 = scalar_lea.vmem %s0, %s33
    %s35 = sadd.s32 0, 0
    %s36 = smul.u32 8, %s35
    %p37 = scmp.lt.s32.totalorder %s36, 7
    %s38 = scalar_select %p37, %s36, 7
    %s39 = smul.addr %s38, 8
    %s40 = scalar_lea.vmem %s0, %s39
    %s41 = sadd.s32 0, 0
    %s42 = smul.u32 8, %s41
    %p43 = scmp.eq.s32.totalorder 0, 0
    // Predicated region
    $region22: #{tpu_custom_call.1} parent=1 // pred_check
      %p44 = pneg %p43
    $region23: #{tpu_custom_call.1} parent=1 // pred_check_branch
      %46 = sbr.rel (%p44) target = $region25
    $region24: #{tpu_custom_call.1} parent=1 // pred_region
      %47 = vst [vmem:[#allocation2] sm:$0x3] 0.0
    $region25: #{tpu_custom_call.1} parent=1 // pred_fallthru
      _
    %v48 = vld [vmem:[%s40] sm:$0xff]
    %v49 = vld [vmem:[%s40 + $0x8] sm:$0xff]
    %v50 = vld [vmem:[%s40 + $0x10] sm:$0xff]
    %v51 = vld [vmem:[%s40 + $0x18] sm:$0xff]
    %v52 = vld [vmem:[%s40 + $0x20] sm:$0xff]
    %v53 = vld [vmem:[%s40 + $0x28] sm:$0xff]
    %v54 = vld [vmem:[%s40 + $0x30] sm:$0xff]
    %v55 = vld [vmem:[%s40 + $0x38] sm:$0xff]
    %v56 = vld [vmem:[%s40 + $0x40] sm:$0xff]
    %v57 = vld [vmem:[%s40 + $0x48] sm:$0xff]
    %v58 = vld [vmem:[%s40 + $0x50] sm:$0xff]
    %v59 = vld [vmem:[%s40 + $0x58] sm:$0xff]
    %v60 = vld [vmem:[%s40 + $0x60] sm:$0xff]
    %v61 = vld [vmem:[%s40 + $0x68] sm:$0xff]
    %v62 = vld [vmem:[%s40 + $0x70] sm:$0xff]
    %v63 = vld [vmem:[%s40 + $0x78] sm:$0xff]
    %v64 = vld [vmem:[%s1] sm:$0x7]
    %v65 = vld [vmem:[%s2] sm:$0x1]
    %v67 = vperm.slane %v65, 0
    %vm69 = vcmask 23552
    %v71 = vsel %vm69, %v48, 0
    %v74 = vsel %vm69, %v49, 0
    %v77 = vsel %vm69, %v50, 0
    %v80 = vsel %vm69, %v51, 0
    %v83 = vsel %vm69, %v52, 0
    %v86 = vsel %vm69, %v53, 0
    %v89 = vsel %vm69, %v54, 0
    %v92 = vsel %vm69, %v55, 0
    %v95 = vsel %vm69, %v56, 0
    %v98 = vsel %vm69, %v57, 0
    %v101 = vsel %vm69, %v58, 0
    %v104 = vsel %vm69, %v59, 0
    %v107 = vsel %vm69, %v60, 0
    %v110 = vsel %vm69, %v61, 0
    %v113 = vsel %vm69, %v62, 0
    %v116 = vsel %vm69, %v63, 0
    %vm118 = vcmask 1042432
    %v120 = vsel %vm118, %v64, 0
    %122 = vmatpush.msra.mxu0 0.0
    %123 = vmatpush.msra.mxu0 0.0
    %124 = vmatpush.msra.mxu0 0.0
    %125 = vmatpush.msra.mxu0 0.0
    %126 = vmatpush.msra.mxu0 0.0
    %127 = vmatpush.msra.mxu0 0.0
    %128 = vmatpush.msra.mxu0 0.0
    %129 = vmatpush.msra.mxu0 0.0
    %130 = vmatpush.msra.mxu0 0.0
    %131 = vmatpush.msra.mxu0 0.0
    %132 = vmatpush.msra.mxu0 0.0
    %133 = vmatpush.msra.mxu0 0.0
    %134 = vmatpush.msra.mxu0 0.0
    %135 = vmatpush.msra.mxu0 0.0
    %136 = vmatpush.msra.mxu0 0.0
    %137 = vmatpush.msra.mxu0 %v120
    %138 = vmatmul.f32.gmra.mxu0 %v71
    %v139 = vpop.f32.mrf.mxu0
    %v140 = vadd.f32 %v67, %v139
    %141 = vmatmul.f32.gmra.mxu0 %v74
    %v142 = vpop.f32.mrf.mxu0
    %v143 = vadd.f32 %v67, %v142
    %144 = vmatmul.f32.gmra.mxu0 %v77
    %v145 = vpop.f32.mrf.mxu0
    %v146 = vadd.f32 %v67, %v145
    %147 = vmatmul.f32.gmra.mxu0 %v80
    %v148 = vpop.f32.mrf.mxu0
    %v149 = vadd.f32 %v67, %v148
    %150 = vmatmul.f32.gmra.mxu0 %v83
    %v151 = vpop.f32.mrf.mxu0
    %v152 = vadd.f32 %v67, %v151
    %153 = vmatmul.f32.gmra.mxu0 %v86
    %v154 = vpop.f32.mrf.mxu0
    %v155 = vadd.f32 %v67, %v154
    %156 = vmatmul.f32.gmra.mxu0 %v89
    %v157 = vpop.f32.mrf.mxu0
    %v158 = vadd.f32 %v67, %v157
    %159 = vmatmul.f32.gmra.mxu0 %v92
    %v160 = vpop.f32.mrf.mxu0
    %v161 = vadd.f32 %v67, %v160
    %162 = vmatmul.f32.gmra.mxu0 %v95
    %v163 = vpop.f32.mrf.mxu0
    %v164 = vadd.f32 %v67, %v163
    %165 = vmatmul.f32.gmra.mxu0 %v98
    %v166 = vpop.f32.mrf.mxu0
    %v167 = vadd.f32 %v67, %v166
    %168 = vmatmul.f32.gmra.mxu0 %v101
    %v169 = vpop.f32.mrf.mxu0
    %v170 = vadd.f32 %v67, %v169
    %171 = vmatmul.f32.gmra.mxu0 %v104
    %v172 = vpop.f32.mrf.mxu0
    %v173 = vadd.f32 %v67, %v172
    %174 = vmatmul.f32.gmra.mxu0 %v107
    %v175 = vpop.f32.mrf.mxu0
    %v176 = vadd.f32 %v67, %v175
    %177 = vmatmul.f32.gmra.mxu0 %v110
    %v178 = vpop.f32.mrf.mxu0
    %v179 = vadd.f32 %v67, %v178
    %180 = vmatmul.f32.gmra.mxu0 %v113
    %v181 = vpop.f32.mrf.mxu0
    %v182 = vadd.f32 %v67, %v181
    %183 = vmatmul.f32.gmra.mxu0 %v116
    %v184 = vpop.f32.mrf.mxu0
    %v185 = vadd.f32 %v67, %v184
    %186 = vdwg.mxu0
    %v187 = vmax.f32 %v140, 0.0
    %v188 = vmax.f32 %v143, 0.0
    %v189 = vmax.f32 %v146, 0.0
    %v190 = vmax.f32 %v149, 0.0
    %v191 = vmax.f32 %v152, 0.0
    %v192 = vmax.f32 %v155, 0.0
    %v193 = vmax.f32 %v158, 0.0
    %v194 = vmax.f32 %v161, 0.0
    %v195 = vmax.f32 %v164, 0.0
    %v196 = vmax.f32 %v167, 0.0
    %v197 = vmax.f32 %v170, 0.0
    %v198 = vmax.f32 %v173, 0.0
    %v199 = vmax.f32 %v176, 0.0
    %v200 = vmax.f32 %v179, 0.0
    %v201 = vmax.f32 %v182, 0.0
    %v202 = vmax.f32 %v185, 0.0
    %v203 = vld [vmem:[%s3] sm:$0xff]
    %v204 = vld [vmem:[%s3 + $0x8] sm:$0xff]
    %v205 = vld [vmem:[%s3 + $0x10] sm:$0xff]
    %v206 = vld [vmem:[%s3 + $0x18] sm:$0xff]
    %v207 = vld [vmem:[%s3 + $0x20] sm:$0xff]
    %v208 = vld [vmem:[%s3 + $0x28] sm:$0xff]
    %v209 = vld [vmem:[%s3 + $0x30] sm:$0xff]
    %v210 = vld [vmem:[%s3 + $0x38] sm:$0xff]
    %v211 = vld [vmem:[%s4] sm:$0x1]
    %v213 = vperm.slane %v211, 0
    %vm215 = vcmask 523264
    %v217 = vsel %vm215, %v187, 0
    %v220 = vsel %vm215, %v188, 0
    %v223 = vsel %vm215, %v189, 0
    %v226 = vsel %vm215, %v190, 0
    %v229 = vsel %vm215, %v191, 0
    %v232 = vsel %vm215, %v192, 0
    %v235 = vsel %vm215, %v193, 0
    %v238 = vsel %vm215, %v194, 0
    %v241 = vsel %vm215, %v195, 0
    %v244 = vsel %vm215, %v196, 0
    %v247 = vsel %vm215, %v197, 0
    %v250 = vsel %vm215, %v198, 0
    %v253 = vsel %vm215, %v199, 0
    %v256 = vsel %vm215, %v200, 0
    %v259 = vsel %vm215, %v201, 0
    %v262 = vsel %vm215, %v202, 0
    %264 = vmatpush.msra.mxu0 0.0
    %265 = vmatpush.msra.mxu0 0.0
    %266 = vmatpush.msra.mxu0 0.0
    %267 = vmatpush.msra.mxu0 0.0
    %268 = vmatpush.msra.mxu0 0.0
    %269 = vmatpush.msra.mxu0 0.0
    %270 = vmatpush.msra.mxu0 0.0
    %271 = vmatpush.msra.mxu0 0.0
    %272 = vmatpush.msra.mxu0 %v210
    %273 = vmatpush.msra.mxu0 %v209
    %274 = vmatpush.msra.mxu0 %v208
    %275 = vmatpush.msra.mxu0 %v207
    %276 = vmatpush.msra.mxu0 %v206
    %277 = vmatpush.msra.mxu0 %v205
    %278 = vmatpush.msra.mxu0 %v204
    %279 = vmatpush.msra.mxu0 %v203
    %280 = vmatmul.f32.gmra.mxu0 %v217
    %v281 = vpop.f32.mrf.mxu0
    %v282 = vadd.f32 %v213, %v281
    %283 = vmatmul.f32.gmra.mxu0 %v220
    %v284 = vpop.f32.mrf.mxu0
    %v285 = vadd.f32 %v213, %v284
    %286 = vmatmul.f32.gmra.mxu0 %v223
    %v287 = vpop.f32.mrf.mxu0
    %v288 = vadd.f32 %v213, %v287
    %289 = vmatmul.f32.gmra.mxu0 %v226
    %v290 = vpop.f32.mrf.mxu0
    %v291 = vadd.f32 %v213, %v290
    %292 = vmatmul.f32.gmra.mxu0 %v229
    %v293 = vpop.f32.mrf.mxu0
    %v294 = vadd.f32 %v213, %v293
    %295 = vmatmul.f32.gmra.mxu0 %v232
    %v296 = vpop.f32.mrf.mxu0
    %v297 = vadd.f32 %v213, %v296
    %298 = vmatmul.f32.gmra.mxu0 %v235
    %v299 = vpop.f32.mrf.mxu0
    %v300 = vadd.f32 %v213, %v299
    %301 = vmatmul.f32.gmra.mxu0 %v238
    %v302 = vpop.f32.mrf.mxu0
    %v303 = vadd.f32 %v213, %v302
    %304 = vmatmul.f32.gmra.mxu0 %v241
    %v305 = vpop.f32.mrf.mxu0
    %v306 = vadd.f32 %v213, %v305
    %307 = vmatmul.f32.gmra.mxu0 %v244
    %v308 = vpop.f32.mrf.mxu0
    %v309 = vadd.f32 %v213, %v308
    %310 = vmatmul.f32.gmra.mxu0 %v247
    %v311 = vpop.f32.mrf.mxu0
    %v312 = vadd.f32 %v213, %v311
    %313 = vmatmul.f32.gmra.mxu0 %v250
    %v314 = vpop.f32.mrf.mxu0
    %v315 = vadd.f32 %v213, %v314
    %316 = vmatmul.f32.gmra.mxu0 %v253
    %v317 = vpop.f32.mrf.mxu0
    %v318 = vadd.f32 %v213, %v317
    %319 = vmatmul.f32.gmra.mxu0 %v256
    %v320 = vpop.f32.mrf.mxu0
    %v321 = vadd.f32 %v213, %v320
    %322 = vmatmul.f32.gmra.mxu0 %v259
    %v323 = vpop.f32.mrf.mxu0
    %v324 = vadd.f32 %v213, %v323
    %325 = vmatmul.f32.gmra.mxu0 %v262
    %v326 = vpop.f32.mrf.mxu0
    %v327 = vadd.f32 %v213, %v326
    %328 = vdwg.mxu0
    %v329 = vmax.f32 %v282, 0.0
    %v330 = vmax.f32 %v285, 0.0
    %v331 = vmax.f32 %v288, 0.0
    %v332 = vmax.f32 %v291, 0.0
    %v333 = vmax.f32 %v294, 0.0
    %v334 = vmax.f32 %v297, 0.0
    %v335 = vmax.f32 %v300, 0.0
    %v336 = vmax.f32 %v303, 0.0
    %v337 = vmax.f32 %v306, 0.0
    %v338 = vmax.f32 %v309, 0.0
    %v339 = vmax.f32 %v312, 0.0
    %v340 = vmax.f32 %v315, 0.0
    %v341 = vmax.f32 %v318, 0.0
    %v342 = vmax.f32 %v321, 0.0
    %v343 = vmax.f32 %v324, 0.0
    %v344 = vmax.f32 %v327, 0.0
    %v345 = vmax.f32 %v329, %v331
    %v346 = vmax.f32 %v330, %v332
    %v347 = vmax.f32 %v345, %v333
    %v348 = vmax.f32 %v346, %v334
    %v349 = vmax.f32 %v347, %v335
    %v350 = vmax.f32 %v348, %v336
    %v351 = vmax.f32 %v349, %v350
    %v352 = vrot.slane %v351, 4
    %v353 = vmax.f32 %v351, %v352
    %v354 = vrot.slane %v353, 2
    %v355 = vmax.f32 %v353, %v354
    %v356 = vrot.slane %v355, 1
    %v357 = vmax.f32 %v355, %v356
    %v358 = vmax.f32 %v337, %v339
    %v359 = vmax.f32 %v338, %v340
    %v360 = vmax.f32 %v358, %v341
    %v361 = vmax.f32 %v359, %v342
    %v362 = vmax.f32 %v360, %v343
    %v363 = vmax.f32 %v361, %v344
    %v364 = vmax.f32 %v362, %v363
    %v365 = vrot.slane %v364, 4
    %v366 = vmax.f32 %v364, %v365
    %v367 = vrot.slane %v366, 2
    %v368 = vmax.f32 %v366, %v367
    %v369 = vrot.slane %v368, 1
    %v370 = vmax.f32 %v368, %v369
    %v371 = vld [vmem:[#allocation2] sm:$0x3]
    %vm374 = vcmask 1041409
    %v375 = vsel %vm374, %v370, %v357
    %v377 = vmax.f32 %v371, %v375
    %378 = vst [vmem:[#allocation2] sm:$0x3] %v377
    // Predicated region
    $region26: #{tpu_custom_call.1} parent=1 // pred_check
      _
    $region27: #{tpu_custom_call.1} parent=1 // pred_check_branch
      %380 = sbr.rel (0) target = $region29
    $region28: #{tpu_custom_call.1} parent=1 // pred_region
      %382 = vsyncadd [#allocation3], 0
      %s384 = sshll.u32 [#allocation2], 4
      %s385 = int_to_ptr.vmem [resolvable:$true] %s384
      %s386 = sshll.u32 %s5, 4
      %s387 = int_to_ptr.hbm [resolvable:$true] %s386
      %389 = dma.vmem_to_hbm [thread:$0]  %s385, 32, %s387, [#allocation3]
    $region29: #{tpu_custom_call.1} parent=1 // pred_fallthru
      _
    // Predicated region
    $region30: #{tpu_custom_call.1} parent=1 // pred_check
      _
    $region31: #{tpu_custom_call.1} parent=1 // pred_check_branch
      %391 = sbr.rel (0) target = $region33
    $region32: #{tpu_custom_call.1} parent=1 // pred_region
      %393 = dma.done [#allocation3], 32
    $region33: #{tpu_custom_call.1} parent=1 // pred_fallthru
      _
    %394 = vsyncpa [#allocation3], 1

</llo_original>
